<compile_context>
chip_gen: v7x
topology: tpu7x:2x2x1
jax: 0.10.0
libtpu: 0.0.40
codegen_flags: <defaults>
</compile_context>

<pallas_src>
import functools

import numpy as np
import jax
import jax.numpy as jnp
from jax import lax
from jax.experimental import pallas as pl
from jax.experimental.pallas import tpu as pltpu

NCE_T = 0.07          # opt.nce_T
COS_EPS = 1e-8        # torch.nn.CosineSimilarity eps
DIAG_FILL = -10.0     # masked_fill_ value (applied before the 1/T scale)
NEG_BIG = -1e30       # "minus infinity" for padded key rows


def _patch_nce_kernel(qt_ref, kn_ref, pos_ref, o_ref, *,
                      n_valid, diag_fill, mask_rows):
    """One row tile of queries vs. ALL keys.

    qt_ref : (d_pad, tm)      q^T, L2-normalized, pre-scaled by 1/T (compute dtype)
    kn_ref : (n_pad, d_pad)   all keys, L2-normalized (compute dtype, resident)
    pos_ref: (1, tm)          exact positive logits cos(q_i,k_i)/T (f32)
    o_ref  : (1, tm)          per-sample loss (f32, lane-dense)
    """
    i = pl.program_id(0)
    n_pad, _ = kn_ref.shape
    tm = qt_ref.shape[1]

    # Single MXU pass: st[key, query] = <k_key, q_query> / T, f32 accumulate.
    st = jnp.dot(kn_ref[...], qt_ref[...],
                 preferred_element_type=jnp.float32)            # (n_pad, tm)

    # Diagonal fill (l_neg.masked_fill_(eye, -10) before /T) + padded-key mask.
    row_k = lax.broadcasted_iota(jnp.int32, (n_pad, tm), 0)     # global key idx
    col_q = i * tm + lax.broadcasted_iota(jnp.int32, (n_pad, tm), 1)  # query idx
    st = jnp.where(row_k == col_q, diag_fill, st)
    if mask_rows:   # static: only when the batch dim was padded
        st = jnp.where(row_k >= n_valid, NEG_BIG, st)

    # Plain logsumexp over [pos, negatives]; reductions along sublanes give
    # lane vectors, so the store below is lane-dense with no transpose.
    pos = pos_ref[...]                                          # (1, tm)
    m = jnp.maximum(jnp.max(st, axis=0, keepdims=True), pos)    # (1, tm)
    l = jnp.sum(jnp.exp(st - m), axis=0, keepdims=True) + jnp.exp(pos - m)
    o_ref[...] = (m + jnp.log(l) - pos).astype(o_ref.dtype)


def _l2_normalize(x):
    return x * lax.rsqrt(
        jnp.maximum(jnp.sum(x * x, axis=-1, keepdims=True), COS_EPS * COS_EPS))


def patch_nce_loss(feat_q, feat_k, *, nce_T=NCE_T,
                   compute_dtype=jnp.bfloat16, max_tm=512,
                   vmem_budget=24 * 1024 * 1024):
    """Per-sample PatchNCE losses, shape (batch,)."""
    n, d = feat_q.shape
    assert feat_k.shape == (n, d)
    inv_t = float(1.0 / nce_T)

    # ---- hoisted out of the kernel: normalization, positives, 1/T fold ----
    q = feat_q.astype(jnp.float32)
    k = feat_k.astype(jnp.float32)
    qn = _l2_normalize(q)
    kn = _l2_normalize(k)
    l_pos = jnp.sum(qn * kn, axis=-1) * inv_t          # exact positives (f32)
    qn = qn * inv_t                                    # fold 1/T into q

    n_pad = 128 * pl.cdiv(n, 128)
    d_pad = 128 * pl.cdiv(d, 128)
    isz = jnp.dtype(compute_dtype).itemsize

    # Row-tile size: largest candidate that divides n_pad and fits the budget
    # (2x resident keys for double-buffer accounting + streamed q tile +
    #  f32 similarity slab + tiny pos/out rows).
    tm = 128
    for cand in (512, 384, 256, 128):
        if cand > max_tm or n_pad % cand:
            continue
        need = (2 * n_pad * d_pad * isz          # keys (double-buffered)
                + 2 * d_pad * cand * isz         # q^T tile (double-buffered)
                + n_pad * cand * 4               # f32 similarity slab
                + 4 * cand * 4)                  # pos / out rows
        if need <= vmem_budget:
            tm = cand
            break

    # Zero padding changes neither dot products nor the (pre-computed) norms.
    qt_p = jnp.pad(qn, ((0, n_pad - n), (0, d_pad - d))).astype(compute_dtype).T
    kn_p = jnp.pad(kn, ((0, n_pad - n), (0, d_pad - d))).astype(compute_dtype)
    pos_p = jnp.pad(l_pos, (0, n_pad - n)).reshape(1, n_pad)          # f32

    kernel = functools.partial(
        _patch_nce_kernel, n_valid=n, diag_fill=float(DIAG_FILL * inv_t),
        mask_rows=(n_pad != n))

    cost = pl.CostEstimate(
        flops=2 * n_pad * n_pad * d_pad + 8 * n_pad * n_pad,
        transcendentals=n_pad * n_pad + 2 * n_pad,
        bytes_accessed=2 * n_pad * d_pad * isz + 2 * n_pad * 4)

    out = pl.pallas_call(
        kernel,
        out_shape=jax.ShapeDtypeStruct((1, n_pad), jnp.float32),
        grid_spec=pltpu.PrefetchScalarGridSpec(
            num_scalar_prefetch=0,
            grid=(n_pad // tm,),
            in_specs=[
                pl.BlockSpec((d_pad, tm), lambda i: (0, i)),     # q^T / T tile
                pl.BlockSpec((n_pad, d_pad), lambda i: (0, 0)),  # keys (resident)
                pl.BlockSpec((1, tm), lambda i: (0, i)),         # positives
            ],
            out_specs=pl.BlockSpec((1, tm), lambda i: (0, i)),   # lane-dense loss
        ),
        # On v7x, pltpu.CORE_PARALLEL on this axis is the knob to force a
        # split across the two TensorCores; "parallel" is safe everywhere.
        compiler_params=pltpu.CompilerParams(
            dimension_semantics=("parallel",),
            vmem_limit_bytes=32 * 1024 * 1024),
        cost_estimate=cost,
    )(qt_p, kn_p, pos_p)
    return out[0, :n]


def _patch_nce_ref(feat_q, feat_k, nce_T=NCE_T):
    """Pure-jnp mirror of PatchNCELoss.forward (reduction='none')."""
    q = feat_q.astype(jnp.float32)
    k = feat_k.astype(jnp.float32)
    qn, kn = _l2_normalize(q), _l2_normalize(k)
    l_pos = jnp.sum(qn * kn, axis=-1)[:, None]                  # (n, 1)
    l_neg = qn @ kn.T                                           # (n, n)
    l_neg = jnp.where(jnp.eye(q.shape[0], dtype=bool), DIAG_FILL, l_neg)
    logits = jnp.concatenate([l_pos, l_neg], axis=1) / nce_T
    return jax.scipy.special.logsumexp(logits, axis=1) - logits[:, 0]


if __name__ == "__main__":
    key = jax.random.PRNGKey(0)
    kq, kk, kq2, kk2 = jax.random.split(key, 4)

    # Small case: batch of 8 patch features, dim 32.
    N, D = 8, 32
    feat_q = jax.random.normal(kq, (N, D), dtype=jnp.float32)
    feat_k = jax.random.normal(kk, (N, D), dtype=jnp.float32)
    ref = jax.block_until_ready(_patch_nce_ref(feat_q, feat_k))

    # f32 MXU path: tight check of the kernel logic.
    loss_f32 = jax.block_until_ready(
        patch_nce_loss(feat_q, feat_k, compute_dtype=jnp.float32))
    if not np.allclose(np.asarray(loss_f32), np.asarray(ref),
                       rtol=5e-3, atol=5e-3):
        raise AssertionError(f"f32 mismatch:\npallas={loss_f32}\nref   ={ref}")

    # bf16 MXU path (default): f32 accumulation + exact f32 positives.
    loss_bf16 = jax.block_until_ready(patch_nce_loss(feat_q, feat_k))
    if not np.allclose(np.asarray(loss_bf16), np.asarray(ref),
                       rtol=5e-2, atol=5e-2):
        raise AssertionError(f"bf16 mismatch:\npallas={loss_bf16}\nref   ={ref}")

    # Multi-row-tile + padded-batch path (grid of 3, padded keys masked).
    N2, D2 = 300, 48
    fq2 = jax.random.normal(kq2, (N2, D2), dtype=jnp.float32)
    fk2 = jax.random.normal(kk2, (N2, D2), dtype=jnp.float32)
    ref2 = jax.block_until_ready(_patch_nce_ref(fq2, fk2))
    loss2 = jax.block_until_ready(
        patch_nce_loss(fq2, fk2, compute_dtype=jnp.float32, max_tm=128))
    if not np.allclose(np.asarray(loss2), np.asarray(ref2),
                       rtol=5e-3, atol=5e-3):
        raise AssertionError("multi-tile f32 mismatch")

    print("KERNEL_OK")
</pallas_src>

<mosaic_0001>
module attributes {stable_mosaic.version = 11 : i64} {
  func.func @_patch_nce_kernel(%arg0: i32, %arg1: memref<128x128xf32, #tpu.memory_space<vmem>>, %arg2: memref<128x128xf32, #tpu.memory_space<vmem>>, %arg3: memref<1x128xf32, #tpu.memory_space<vmem>>, %arg4: memref<1x128xf32, #tpu.memory_space<vmem>>) attributes {dimension_semantics = [#tpu.dimension_semantics<parallel>], iteration_bounds = array<i64: 1>, scalar_prefetch = 0 : i64, scratch_operands = 0 : i64, tpu.core_type = #tpu.core_type<tc>, window_params = [{transform_indices = @transform_0, window_bounds = array<i64: 128, 128>}, {pipeline_mode = #tpu.pipeline_mode<synchronous>, transform_indices = @transform_1, window_bounds = array<i64: 128, 128>}, {transform_indices = @transform_2, window_bounds = array<i64: 1, 128>}, {transform_indices = @transform_3, window_bounds = array<i64: 1, 128>}]} {
    %c0 = arith.constant 0 : index
    %c0_0 = arith.constant 0 : index
    %0 = vector.load %arg2[%c0, %c0_0] : memref<128x128xf32, #tpu.memory_space<vmem>>, vector<128x128xf32>
    %c0_1 = arith.constant 0 : index
    %c0_2 = arith.constant 0 : index
    %1 = vector.load %arg1[%c0_1, %c0_2] : memref<128x128xf32, #tpu.memory_space<vmem>>, vector<128x128xf32>
    %cst = arith.constant dense<0.000000e+00> : vector<128x128xf32>
    %2 = tpu.matmul %0, %1, %cst {dimension_numbers = #tpu.dot_dimension_numbers<[1], [0], [0], [1], [0, 0, 1, 1], [], []>} : vector<128x128xf32>, vector<128x128xf32>, vector<128x128xf32> -> vector<128x128xf32>
    %3 = tpu.iota {dimensions = array<i32: 0>} : vector<128x128xi32>
    %c128_i32 = arith.constant 128 : i32
    %4 = arith.muli %arg0, %c128_i32 : i32
    %5 = tpu.iota {dimensions = array<i32: 1>} : vector<128x128xi32>
    %6 = vector.broadcast %4 : i32 to vector<128x128xi32>
    %7 = arith.addi %6, %5 : vector<128x128xi32>
    %8 = arith.cmpi eq, %3, %7 : vector<128x128xi32>
    %cst_3 = arith.constant -142.857147 : f32
    %9 = vector.broadcast %cst_3 : f32 to vector<128x128xf32>
    %10 = arith.select %8, %9, %2 : vector<128x128xi1>, vector<128x128xf32>
    %c8_i32 = arith.constant 8 : i32
    %11 = vector.broadcast %c8_i32 : i32 to vector<128x128xi32>
    %12 = arith.cmpi sge, %3, %11 : vector<128x128xi32>
    %cst_4 = arith.constant -1.000000e+30 : f32
    %13 = vector.broadcast %cst_4 : f32 to vector<128x128xf32>
    %14 = arith.select %12, %13, %10 : vector<128x128xi1>, vector<128x128xf32>
    %c0_5 = arith.constant 0 : index
    %c0_6 = arith.constant 0 : index
    %15 = vector.load %arg3[%c0_5, %c0_6] : memref<1x128xf32, #tpu.memory_space<vmem>>, vector<1x128xf32>
    %cst_7 = arith.constant dense<0xFF800000> : vector<128xf32>
    %16 = vector.multi_reduction <maximumf>, %14, %cst_7 [0] : vector<128x128xf32> to vector<128xf32>
    %17 = vector.shape_cast %16 : vector<128xf32> to vector<1x128xf32>
    %18 = arith.maximumf %17, %15 : vector<1x128xf32>
    %19 = vector.broadcast %18 : vector<1x128xf32> to vector<128x128xf32>
    %20 = arith.subf %14, %19 : vector<128x128xf32>
    %21 = math.exp %20 : vector<128x128xf32>
    %cst_8 = arith.constant dense<0.000000e+00> : vector<128xf32>
    %22 = vector.multi_reduction <add>, %21, %cst_8 [0] : vector<128x128xf32> to vector<128xf32>
    %23 = vector.shape_cast %22 : vector<128xf32> to vector<1x128xf32>
    %24 = arith.subf %15, %18 : vector<1x128xf32>
    %25 = math.exp %24 : vector<1x128xf32>
    %26 = arith.addf %23, %25 : vector<1x128xf32>
    %27 = math.log %26 : vector<1x128xf32>
    %28 = arith.addf %18, %27 : vector<1x128xf32>
    %29 = arith.subf %28, %15 : vector<1x128xf32>
    %c0_9 = arith.constant 0 : index
    %c0_10 = arith.constant 0 : index
    %30 = vector.load %arg4[%c0_9, %c0_10] : memref<1x128xf32, #tpu.memory_space<vmem>>, vector<1x128xf32>
    tpu.vector_store %arg4[%c0_9, %c0_10], %29 {strides = array<i32>} : memref<1x128xf32, #tpu.memory_space<vmem>>, vector<1x128xf32>,
    return
  }
  func.func @transform_0(%arg0: i32) -> (i32, i32) {
    %c0_i32 = arith.constant 0 : i32
    %c0_i32_0 = arith.constant 0 : i32
    return %c0_i32, %arg0 : i32, i32
  }
  func.func @transform_1(%arg0: i32) -> (i32, i32) {
    %c0_i32 = arith.constant 0 : i32
    %c0_i32_0 = arith.constant 0 : i32
    %c0_i32_1 = arith.constant 0 : i32
    return %c0_i32, %c0_i32_0 : i32, i32
  }
  func.func @transform_2(%arg0: i32) -> (i32, i32) {
    %c0_i32 = arith.constant 0 : i32
    %c0_i32_0 = arith.constant 0 : i32
    return %c0_i32, %arg0 : i32, i32
  }
  func.func @transform_3(%arg0: i32) -> (i32, i32) {
    %c0_i32 = arith.constant 0 : i32
    %c0_i32_0 = arith.constant 0 : i32
    return %c0_i32, %arg0 : i32, i32
  }
}

</mosaic_0001>

<llo_original>
// kernel: tpu_custom_call.1
$region0: #{tpu_custom_call.1}
  #allocation0 [shape = 'u32[]', space=smem, size = 0x4, offset = 0x4, fixed_abs, tag = 'smem constant byte address 0x4 - core index']
  #allocation1 [shape = 'u32[144,128]{1,0:T(1,128)}', space=vmem, size = 0x12000, scoped, tag = 'internal scratch']
  %s0 = inlined_call_operand.hbm [shape: f32[128,128], index: 0, kind: input, shape index: {}]
  %s1 = inlined_call_operand.hbm [shape: f32[128,128], index: 1, kind: input, shape index: {}]
  %s2 = inlined_call_operand.vmem [shape: f32[1,128], index: 2, kind: input, shape index: {}]
  %s3 = inlined_call_operand.hbm [shape: f32[1,128], index: 3, kind: output, shape index: {}]
  %s4 = sld [smem:[#allocation0]]
  $region30: #{tpu_custom_call.1} parent=0
    _
  %s6 = ssub.s32 1, %s4
  %s7 = scalar_select 0, %s6, %s4
  $region1: #{tpu_custom_call.1} parent=0
    #allocation2 [shape = 'u8[65536]{0}', space=vmem, size = 0x10000, scoped, tag = 'input window, operand 0, single buffered']
    #allocation3 [shape = 's32[1]{0}', space=sflag, size = 0x4, scoped, tag = 'scoped memory for tpu_custom_call.1']
    #allocation4 [shape = 's32[1]{0}', space=sflag, size = 0x4, scoped, tag = 'scoped memory for tpu_custom_call.1']
    #allocation5 [shape = 'u8[65536]{0}', space=vmem, size = 0x10000, scoped, tag = 'input window, operand 1, single buffered']
    #allocation6 [shape = 's32[1]{0}', space=sflag, size = 0x4, scoped, tag = 'scoped memory for tpu_custom_call.1']
    #allocation7 [shape = 'u8[512]{0}', space=vmem, size = 0x400, scoped, tag = 'output window, operand 0, single buffered']
    %8 = vsyncpa [#allocation3], 0
    %9 = vsyncpa [#allocation6], 0
    %10 = vsyncpa [#allocation4], 0
    // Predicated region
    $region2: #{tpu_custom_call.1} parent=1 // pred_check
      _
    $region3: #{tpu_custom_call.1} parent=1 // pred_check_branch
      %12 = sbr.rel (0) target = $region5
    $region4: #{tpu_custom_call.1} parent=1 // pred_region
      %s14 = ssub.s32 2048, 2048
      %15 = vsyncadd [#allocation3], %s14
      %s16 = sshll.u32 [#allocation2], 4
      %s17 = int_to_ptr.vmem [resolvable:$true] %s16
      %22 = dma.hbm_to_vmem [thread:$0]  %s0, 2048, %s17, [#allocation3], 128, 128, 8
    $region5: #{tpu_custom_call.1} parent=1 // pred_fallthru
      _
    // Predicated region
    $region6: #{tpu_custom_call.1} parent=1 // pred_check
      _
    $region7: #{tpu_custom_call.1} parent=1 // pred_check_branch
      %24 = sbr.rel (0) target = $region9
    $region8: #{tpu_custom_call.1} parent=1 // pred_region
      %s26 = ssub.s32 2048, 2048
      %27 = vsyncadd [#allocation6], %s26
      %s28 = sshll.u32 [#allocation5], 4
      %s29 = int_to_ptr.vmem [resolvable:$true] %s28
      %34 = dma.hbm_to_vmem [thread:$0]  %s1, 2048, %s29, [#allocation6], 128, 128, 8
    $region9: #{tpu_custom_call.1} parent=1 // pred_fallthru
      _
    // Predicated region
    $region10: #{tpu_custom_call.1} parent=1 // pred_check
      _
    $region11: #{tpu_custom_call.1} parent=1 // pred_check_branch
      %36 = sbr.rel (0) target = $region13
    $region12: #{tpu_custom_call.1} parent=1 // pred_region
      _
    $region13: #{tpu_custom_call.1} parent=1 // pred_fallthru
      _
    // Predicated region
    $region14: #{tpu_custom_call.1} parent=1 // pred_check
      _
    $region15: #{tpu_custom_call.1} parent=1 // pred_check_branch
      %38 = sbr.rel (0) target = $region17
    $region16: #{tpu_custom_call.1} parent=1 // pred_region
      %39 = dma.done [#allocation3], 2048
    $region17: #{tpu_custom_call.1} parent=1 // pred_fallthru
      _
    // Predicated region
    $region18: #{tpu_custom_call.1} parent=1 // pred_check
      _
    $region19: #{tpu_custom_call.1} parent=1 // pred_check_branch
      %41 = sbr.rel (0) target = $region21
    $region20: #{tpu_custom_call.1} parent=1 // pred_region
      %42 = dma.done [#allocation6], 2048
    $region21: #{tpu_custom_call.1} parent=1 // pred_fallthru
      _
    %v43 = vld [vmem:[#allocation5] sm:$0xff]
    %v44 = vld [vmem:[#allocation5 + $0x8] sm:$0xff]
    %v45 = vld [vmem:[#allocation5 + $0x10] sm:$0xff]
    %v46 = vld [vmem:[#allocation5 + $0x18] sm:$0xff]
    %v47 = vld [vmem:[#allocation5 + $0x20] sm:$0xff]
    %v48 = vld [vmem:[#allocation5 + $0x28] sm:$0xff]
    %v49 = vld [vmem:[#allocation5 + $0x30] sm:$0xff]
    %v50 = vld [vmem:[#allocation5 + $0x38] sm:$0xff]
    %v51 = vld [vmem:[#allocation5 + $0x40] sm:$0xff]
    %v52 = vld [vmem:[#allocation5 + $0x48] sm:$0xff]
    %v53 = vld [vmem:[#allocation5 + $0x50] sm:$0xff]
    %v54 = vld [vmem:[#allocation5 + $0x58] sm:$0xff]
    %v55 = vld [vmem:[#allocation5 + $0x60] sm:$0xff]
    %v56 = vld [vmem:[#allocation5 + $0x68] sm:$0xff]
    %v57 = vld [vmem:[#allocation5 + $0x70] sm:$0xff]
    %v58 = vld [vmem:[#allocation5 + $0x78] sm:$0xff]
    %v59 = vld [vmem:[#allocation2] sm:$0xff]
    %v60 = vld [vmem:[#allocation2 + $0x8] sm:$0xff]
    %v61 = vld [vmem:[#allocation2 + $0x10] sm:$0xff]
    %v62 = vld [vmem:[#allocation2 + $0x18] sm:$0xff]
    %v63 = vld [vmem:[#allocation2 + $0x20] sm:$0xff]
    %v64 = vld [vmem:[#allocation2 + $0x28] sm:$0xff]
    %v65 = vld [vmem:[#allocation2 + $0x30] sm:$0xff]
    %v66 = vld [vmem:[#allocation2 + $0x38] sm:$0xff]
    %v67 = vld [vmem:[#allocation2 + $0x40] sm:$0xff]
    %v68 = vld [vmem:[#allocation2 + $0x48] sm:$0xff]
    %v69 = vld [vmem:[#allocation2 + $0x50] sm:$0xff]
    %v70 = vld [vmem:[#allocation2 + $0x58] sm:$0xff]
    %v71 = vld [vmem:[#allocation2 + $0x60] sm:$0xff]
    %v72 = vld [vmem:[#allocation2 + $0x68] sm:$0xff]
    %v73 = vld [vmem:[#allocation2 + $0x70] sm:$0xff]
    %v74 = vld [vmem:[#allocation2 + $0x78] sm:$0xff]
    %75 = vmatprep.subr.mxu0 0.0
    %76 = vmatpush1.msra.mxu0 %v59
    %77 = vmatprep.subr.mxu0 0.0
    %78 = vmatpush1.msra.mxu0 %v60
    %79 = vmatprep.subr.mxu0 0.0
    %80 = vmatpush1.msra.mxu0 %v61
    %81 = vmatprep.subr.mxu0 0.0
    %82 = vmatpush1.msra.mxu0 %v62
    %83 = vmatprep.subr.mxu0 0.0
    %84 = vmatpush1.msra.mxu0 %v63
    %85 = vmatprep.subr.mxu0 0.0
    %86 = vmatpush1.msra.mxu0 %v64
    %87 = vmatprep.subr.mxu0 0.0
    %88 = vmatpush1.msra.mxu0 %v65
    %89 = vmatprep.subr.mxu0 0.0
    %90 = vmatpush1.msra.mxu0 %v66
    %91 = vmatprep.subr.mxu0 0.0
    %92 = vmatpush1.msra.mxu0 %v67
    %93 = vmatprep.subr.mxu0 0.0
    %94 = vmatpush1.msra.mxu0 %v68
    %95 = vmatprep.subr.mxu0 0.0
    %96 = vmatpush1.msra.mxu0 %v69
    %97 = vmatprep.subr.mxu0 0.0
    %98 = vmatpush1.msra.mxu0 %v70
    %99 = vmatprep.subr.mxu0 0.0
    %100 = vmatpush1.msra.mxu0 %v71
    %101 = vmatprep.subr.mxu0 0.0
    %102 = vmatpush1.msra.mxu0 %v72
    %103 = vmatprep.subr.mxu0 0.0
    %104 = vmatpush1.msra.mxu0 %v73
    %105 = vmatprep.subr.mxu0 0.0
    %106 = vmatpush1.msra.mxu0 %v74
    %107 = vmatprep.subr.mxu0 0.0
    %108 = vmatpush1.msra.mxu0 0.0
    %109 = vmatprep.subr.mxu0 0.0
    %110 = vmatpush1.msra.mxu0 0.0
    %111 = vmatprep.subr.mxu0 0.0
    %112 = vmatpush1.msra.mxu0 0.0
    %113 = vmatprep.subr.mxu0 0.0
    %114 = vmatpush1.msra.mxu0 0.0
    %115 = vmatprep.subr.mxu0 0.0
    %116 = vmatpush1.msra.mxu0 0.0
    %117 = vmatprep.subr.mxu0 0.0
    %118 = vmatpush1.msra.mxu0 0.0
    %119 = vmatprep.subr.mxu0 0.0
    %120 = vmatpush1.msra.mxu0 0.0
    %121 = vmatprep.subr.mxu0 0.0
    %122 = vmatpush1.msra.mxu0 0.0
    %123 = vmatprep.subr.mxu0 0.0
    %124 = vmatpush1.msra.mxu0 0.0
    %125 = vmatprep.subr.mxu0 0.0
    %126 = vmatpush1.msra.mxu0 0.0
    %127 = vmatprep.subr.mxu0 0.0
    %128 = vmatpush1.msra.mxu0 0.0
    %129 = vmatprep.subr.mxu0 0.0
    %130 = vmatpush1.msra.mxu0 0.0
    %131 = vmatprep.subr.mxu0 0.0
    %132 = vmatpush1.msra.mxu0 0.0
    %133 = vmatprep.subr.mxu0 0.0
    %134 = vmatpush1.msra.mxu0 0.0
    %135 = vmatprep.subr.mxu0 0.0
    %136 = vmatpush1.msra.mxu0 0.0
    %137 = vmatprep.subr.mxu0 0.0
    %138 = vmatpush1.msra.mxu0 0.0
    %139 = vmatprep.mubr.f32.mxu0 0.0
    %140 = vmatmul.mubr.f32.gmra.mrb[0].mxu0 %v43
    %v141 = vpop.f32.mrb[0].mxu0
    %v142 = vadd.f32 0.0, %v141
    %v143 = vpop.f32.mrb[0].mxu0
    %144 = vmatprep.mubr.f32.mxu0 0.0
    %145 = vmatmul.mubr.f32.gmra.mrb[0].mxu0 %v44
    %v146 = vpop.f32.mrb[0].mxu0
    %v147 = vadd.f32 0.0, %v146
    %v148 = vpop.f32.mrb[0].mxu0
    %149 = vmatprep.mubr.f32.mxu0 0.0
    %150 = vmatmul.mubr.f32.gmra.mrb[0].mxu0 %v45
    %v151 = vpop.f32.mrb[0].mxu0
    %v152 = vadd.f32 0.0, %v151
    %v153 = vpop.f32.mrb[0].mxu0
    %154 = vmatprep.mubr.f32.mxu0 0.0
    %155 = vmatmul.mubr.f32.gmra.mrb[0].mxu0 %v46
    %v156 = vpop.f32.mrb[0].mxu0
    %v157 = vadd.f32 0.0, %v156
    %v158 = vpop.f32.mrb[0].mxu0
    %159 = vmatprep.mubr.f32.mxu0 0.0
    %160 = vmatmul.mubr.f32.gmra.mrb[0].mxu0 %v47
    %v161 = vpop.f32.mrb[0].mxu0
    %v162 = vadd.f32 0.0, %v161
    %v163 = vpop.f32.mrb[0].mxu0
    %164 = vmatprep.mubr.f32.mxu0 0.0
    %165 = vmatmul.mubr.f32.gmra.mrb[0].mxu0 %v48
    %v166 = vpop.f32.mrb[0].mxu0
    %v167 = vadd.f32 0.0, %v166
    %v168 = vpop.f32.mrb[0].mxu0
    %169 = vmatprep.mubr.f32.mxu0 0.0
    %170 = vmatmul.mubr.f32.gmra.mrb[0].mxu0 %v49
    %v171 = vpop.f32.mrb[0].mxu0
    %v172 = vadd.f32 0.0, %v171
    %v173 = vpop.f32.mrb[0].mxu0
    %174 = vmatprep.mubr.f32.mxu0 0.0
    %175 = vmatmul.mubr.f32.gmra.mrb[0].mxu0 %v50
    %v176 = vpop.f32.mrb[0].mxu0
    %v177 = vadd.f32 0.0, %v176
    %v178 = vpop.f32.mrb[0].mxu0
    %179 = vmatprep.mubr.f32.mxu0 0.0
    %180 = vmatmul.mubr.f32.gmra.mrb[0].mxu0 %v51
    %v181 = vpop.f32.mrb[0].mxu0
    %v182 = vadd.f32 0.0, %v181
    %v183 = vpop.f32.mrb[0].mxu0
    %184 = vmatprep.mubr.f32.mxu0 0.0
    %185 = vmatmul.mubr.f32.gmra.mrb[0].mxu0 %v52
    %v186 = vpop.f32.mrb[0].mxu0
    %v187 = vadd.f32 0.0, %v186
    %v188 = vpop.f32.mrb[0].mxu0
    %189 = vmatprep.mubr.f32.mxu0 0.0
    %190 = vmatmul.mubr.f32.gmra.mrb[0].mxu0 %v53
    %v191 = vpop.f32.mrb[0].mxu0
    %v192 = vadd.f32 0.0, %v191
    %v193 = vpop.f32.mrb[0].mxu0
    %194 = vmatprep.mubr.f32.mxu0 0.0
    %195 = vmatmul.mubr.f32.gmra.mrb[0].mxu0 %v54
    %v196 = vpop.f32.mrb[0].mxu0
    %v197 = vadd.f32 0.0, %v196
    %v198 = vpop.f32.mrb[0].mxu0
    %199 = vmatprep.mubr.f32.mxu0 0.0
    %200 = vmatmul.mubr.f32.gmra.mrb[0].mxu0 %v55
    %v201 = vpop.f32.mrb[0].mxu0
    %v202 = vadd.f32 0.0, %v201
    %v203 = vpop.f32.mrb[0].mxu0
    %204 = vmatprep.mubr.f32.mxu0 0.0
    %205 = vmatmul.mubr.f32.gmra.mrb[0].mxu0 %v56
    %v206 = vpop.f32.mrb[0].mxu0
    %v207 = vadd.f32 0.0, %v206
    %v208 = vpop.f32.mrb[0].mxu0
    %209 = vmatprep.mubr.f32.mxu0 0.0
    %210 = vmatmul.mubr.f32.gmra.mrb[0].mxu0 %v57
    %v211 = vpop.f32.mrb[0].mxu0
    %v212 = vadd.f32 0.0, %v211
    %v213 = vpop.f32.mrb[0].mxu0
    %214 = vmatprep.mubr.f32.mxu0 0.0
    %215 = vmatmul.mubr.f32.gmra.mrb[0].mxu0 %v58
    %v216 = vpop.f32.mrb[0].mxu0
    %v217 = vadd.f32 0.0, %v216
    %v218 = vpop.f32.mrb[0].mxu0
    %219 = vdwg.mxu0
    %v220 = vlaneseq
    %v221 = vshrl.u32 %v220, 7
    %v222 = vadd.s32 %v221, 8
    %v223 = vadd.s32 %v221, 16
    %v224 = vadd.s32 %v221, 24
    %v225 = vadd.s32 %v221, 32
    %v226 = vadd.s32 %v221, 40
    %v227 = vadd.s32 %v221, 48
    %v228 = vadd.s32 %v221, 56
    %v229 = vadd.s32 %v221, 64
    %v230 = vadd.s32 %v221, 72
    %v231 = vadd.s32 %v221, 80
    %v232 = vadd.s32 %v221, 88
    %v233 = vadd.s32 %v221, 96
    %v234 = vadd.s32 %v221, 104
    %v235 = vadd.s32 %v221, 112
    %v236 = vadd.s32 %v221, 120
    %s237 = smul.u32 0, 128
    %v238 = vlaneseq
    %v239 = vand.u32 %v238, 127
    %v240 = vstv %s237
    %v241 = vadd.s32 %v240, %v239
    %vm242 = vcmp.eq.s32.totalorder %v221, %v241
    %vm243 = vcmp.eq.s32.totalorder %v222, %v241
    %vm244 = vcmp.eq.s32.totalorder %v223, %v241
    %vm245 = vcmp.eq.s32.totalorder %v224, %v241
    %vm246 = vcmp.eq.s32.totalorder %v225, %v241
    %vm247 = vcmp.eq.s32.totalorder %v226, %v241
    %vm248 = vcmp.eq.s32.totalorder %v227, %v241
    %vm249 = vcmp.eq.s32.totalorder %v228, %v241
    %vm250 = vcmp.eq.s32.totalorder %v229, %v241
    %vm251 = vcmp.eq.s32.totalorder %v230, %v241
    %vm252 = vcmp.eq.s32.totalorder %v231, %v241
    %vm253 = vcmp.eq.s32.totalorder %v232, %v241
    %vm254 = vcmp.eq.s32.totalorder %v233, %v241
    %vm255 = vcmp.eq.s32.totalorder %v234, %v241
    %vm256 = vcmp.eq.s32.totalorder %v235, %v241
    %vm257 = vcmp.eq.s32.totalorder %v236, %v241
    %v258 = vsel %vm242, -142.85715, %v142
    %v259 = vsel %vm243, -142.85715, %v147
    %v260 = vsel %vm244, -142.85715, %v152
    %v261 = vsel %vm245, -142.85715, %v157
    %v262 = vsel %vm246, -142.85715, %v162
    %v263 = vsel %vm247, -142.85715, %v167
    %v264 = vsel %vm248, -142.85715, %v172
    %v265 = vsel %vm249, -142.85715, %v177
    %v266 = vsel %vm250, -142.85715, %v182
    %v267 = vsel %vm251, -142.85715, %v187
    %v268 = vsel %vm252, -142.85715, %v192
    %v269 = vsel %vm253, -142.85715, %v197
    %v270 = vsel %vm254, -142.85715, %v202
    %v271 = vsel %vm255, -142.85715, %v207
    %v272 = vsel %vm256, -142.85715, %v212
    %v273 = vsel %vm257, -142.85715, %v217
    %vm274 = vcmp.ge.s32.totalorder %v221, 8
    %vm275 = vcmp.ge.s32.totalorder %v222, 8
    %vm276 = vcmp.ge.s32.totalorder %v223, 8
    %vm277 = vcmp.ge.s32.totalorder %v224, 8
    %vm278 = vcmp.ge.s32.totalorder %v225, 8
    %vm279 = vcmp.ge.s32.totalorder %v226, 8
    %vm280 = vcmp.ge.s32.totalorder %v227, 8
    %vm281 = vcmp.ge.s32.totalorder %v228, 8
    %vm282 = vcmp.ge.s32.totalorder %v229, 8
    %vm283 = vcmp.ge.s32.totalorder %v230, 8
    %vm284 = vcmp.ge.s32.totalorder %v231, 8
    %vm285 = vcmp.ge.s32.totalorder %v232, 8
    %vm286 = vcmp.ge.s32.totalorder %v233, 8
    %vm287 = vcmp.ge.s32.totalorder %v234, 8
    %vm288 = vcmp.ge.s32.totalorder %v235, 8
    %vm289 = vcmp.ge.s32.totalorder %v236, 8
    %v290 = vsel %vm274, -1e+30, %v258
    %v291 = vsel %vm275, -1e+30, %v259
    %v292 = vsel %vm276, -1e+30, %v260
    %v293 = vsel %vm277, -1e+30, %v261
    %v294 = vsel %vm278, -1e+30, %v262
    %v295 = vsel %vm279, -1e+30, %v263
    %v296 = vsel %vm280, -1e+30, %v264
    %v297 = vsel %vm281, -1e+30, %v265
    %v298 = vsel %vm282, -1e+30, %v266
    %v299 = vsel %vm283, -1e+30, %v267
    %v300 = vsel %vm284, -1e+30, %v268
    %v301 = vsel %vm285, -1e+30, %v269
    %v302 = vsel %vm286, -1e+30, %v270
    %v303 = vsel %vm287, -1e+30, %v271
    %v304 = vsel %vm288, -1e+30, %v272
    %v305 = vsel %vm289, -1e+30, %v273
    %v306 = vld [vmem:[%s2] sm:$0x1]
    %v307 = vmax.f32 %v290, %v294
    %v308 = vmax.f32 %v291, %v295
    %v309 = vmax.f32 %v292, %v296
    %v310 = vmax.f32 %v293, %v297
    %v311 = vmax.f32 %v307, %v298
    %v312 = vmax.f32 %v308, %v299
    %v313 = vmax.f32 %v309, %v300
    %v314 = vmax.f32 %v310, %v301
    %v315 = vmax.f32 %v311, %v302
    %v316 = vmax.f32 %v312, %v303
    %v317 = vmax.f32 %v313, %v304
    %v318 = vmax.f32 %v314, %v305
    %v319 = vmax.f32 %v315, %v316
    %v320 = vmax.f32 %v317, %v318
    %v321 = vmax.f32 %v319, %v320
    %v322 = vrot.slane %v321, 4
    %v323 = vmax.f32 %v321, %v322
    %v324 = vrot.slane %v323, 2
    %v325 = vmax.f32 %v323, %v324
    %v326 = vrot.slane %v325, 1
    %v327 = vmax.f32 %v325, %v326
    %v328 = vmax.f32 %v327, %v306
    %v329 = vlaneseq
    %v330 = vshrl.u32 %v329, 7
    %v331 = vsub.s32 0, %v330
    %v332 = vrot.slane %v328, %v331
    %v333 = vsub.f32 %v290, %v332
    %v334 = vsub.f32 %v291, %v332
    %v335 = vsub.f32 %v292, %v332
    %v336 = vsub.f32 %v293, %v332
    %v337 = vsub.f32 %v294, %v332
    %v338 = vsub.f32 %v295, %v332
    %v339 = vsub.f32 %v296, %v332
    %v340 = vsub.f32 %v297, %v332
    %v341 = vsub.f32 %v298, %v332
    %v342 = vsub.f32 %v299, %v332
    %v343 = vsub.f32 %v300, %v332
    %v344 = vsub.f32 %v301, %v332
    %v345 = vsub.f32 %v302, %v332
    %v346 = vsub.f32 %v303, %v332
    %v347 = vsub.f32 %v304, %v332
    %v348 = vsub.f32 %v305, %v332
    %v349 = vmul.f32 %v333, 1.442695
    %v350 = vpow.pop %v349
    %v351 = vmul.f32 %v334, 1.442695
    %v352 = vpow.pop %v351
    %v353 = vmul.f32 %v335, 1.442695
    %v354 = vpow.pop %v353
    %v355 = vmul.f32 %v336, 1.442695
    %v356 = vpow.pop %v355
    %v357 = vmul.f32 %v337, 1.442695
    %v358 = vpow.pop %v357
    %v359 = vmul.f32 %v338, 1.442695
    %v360 = vpow.pop %v359
    %v361 = vmul.f32 %v339, 1.442695
    %v362 = vpow.pop %v361
    %v363 = vmul.f32 %v340, 1.442695
    %v364 = vpow.pop %v363
    %v365 = vmul.f32 %v341, 1.442695
    %v366 = vpow.pop %v365
    %v367 = vmul.f32 %v342, 1.442695
    %v368 = vpow.pop %v367
    %v369 = vmul.f32 %v343, 1.442695
    %v370 = vpow.pop %v369
    %v371 = vmul.f32 %v344, 1.442695
    %v372 = vpow.pop %v371
    %v373 = vmul.f32 %v345, 1.442695
    %v374 = vpow.pop %v373
    %v375 = vmul.f32 %v346, 1.442695
    %v376 = vpow.pop %v375
    %v377 = vmul.f32 %v347, 1.442695
    %v378 = vpow.pop %v377
    %v379 = vmul.f32 %v348, 1.442695
    %v380 = vpow.pop %v379
    %v381 = vadd.f32 %v350, %v352
    %v382 = vadd.f32 %v381, %v354
    %v383 = vadd.f32 %v382, %v356
    %v384 = vadd.f32 %v383, %v358
    %v385 = vadd.f32 %v384, %v360
    %v386 = vadd.f32 %v385, %v362
    %v387 = vadd.f32 %v386, %v364
    %v388 = vadd.f32 %v387, %v366
    %v389 = vadd.f32 %v388, %v368
    %v390 = vadd.f32 %v389, %v370
    %v391 = vadd.f32 %v390, %v372
    %v392 = vadd.f32 %v391, %v374
    %v393 = vadd.f32 %v392, %v376
    %v394 = vadd.f32 %v393, %v378
    %v395 = vadd.f32 %v394, %v380
    %v396 = vrot.slane %v395, 4
    %v397 = vadd.f32 %v395, %v396
    %v398 = vrot.slane %v397, 2
    %v399 = vadd.f32 %v397, %v398
    %v400 = vrot.slane %v399, 1
    %v401 = vadd.f32 %v399, %v400
    %v402 = vsub.f32 %v306, %v328
    %v403 = vmul.f32 %v402, 1.442695
    %v404 = vpow.pop %v403
    %v405 = vadd.f32 %v401, %v404
    %v406 = vlog2.pop %v405
    %v407 = vmul.f32 %v406, 0.6931472
    %v408 = vadd.f32 %v328, %v407
    %v409 = vsub.f32 %v408, %v306
    %410 = vst [vmem:[#allocation7] sm:$0x1] %v409
    // Predicated region
    $region22: #{tpu_custom_call.1} parent=1 // pred_check
      _
    $region23: #{tpu_custom_call.1} parent=1 // pred_check_branch
      %412 = sbr.rel (0) target = $region25
    $region24: #{tpu_custom_call.1} parent=1 // pred_region
      %s414 = ssub.s32 16, 16
      %415 = vsyncadd [#allocation4], %s414
      %s417 = sshll.u32 [#allocation7], 4
      %s418 = int_to_ptr.vmem [resolvable:$true] %s417
      %420 = dma.vmem_to_hbm [thread:$0]  %s418, 16, %s3, [#allocation4]
    $region25: #{tpu_custom_call.1} parent=1 // pred_fallthru
      _
    // Predicated region
    $region26: #{tpu_custom_call.1} parent=1 // pred_check
      _
    $region27: #{tpu_custom_call.1} parent=1 // pred_check_branch
      %422 = sbr.rel (0) target = $region29
    $region28: #{tpu_custom_call.1} parent=1 // pred_region
      %423 = dma.done [#allocation4], 16
    $region29: #{tpu_custom_call.1} parent=1 // pred_fallthru
      _
    %424 = vsyncpa [#allocation3], 1
    %425 = vsyncpa [#allocation6], 1
    %426 = vsyncpa [#allocation4], 1

</llo_original>
